<compile_context>
chip_gen: v5e
topology: v5e:2x2
jax: 0.10.0
libtpu: 0.0.40
codegen_flags: <defaults>
</compile_context>

<pallas_src>
import jax
import jax.numpy as jnp
from jax.experimental import pallas as pl
from jax.experimental.pallas import tpu as pltpu


def _round_up(n, m):
    return ((n + m - 1) // m) * m


def _anet2_kernel(x_ref, w1_ref, b1_ref, w2_ref, b2_ref, o_ref):
    # x_ref : (TBp, Fp)       VMEM  packed input rows (pack batch rows / row)
    # w1_ref: (Fp, pack*H)    VMEM  block-diagonal layer-1 weight (compute dtype)
    # b1_ref: (1, pack*H)     VMEM  layer-1 bias tiled pack times (f32)
    # w2_ref: (pack, pack*H)  VMEM  block layer-2 weight (f32)
    # b2_ref: (1, 1)          SMEM  layer-2 scalar bias
    # o_ref : (1, pack, TBp)  VMEM  sigmoid outputs; batch row = r*pack + p

    # Layer 1 on the MXU (bf16/f32 inputs, f32 accumulation); bias + ReLU on
    # the VPU in f32 (safe on v5e, which has no bf16 VALU).
    h = jnp.dot(x_ref[...], w1_ref[...], preferred_element_type=jnp.float32)
    h = jnp.maximum(h + b1_ref[...], 0.0)

    # Layer 2 as an NT contraction that directly produces a lane-dense
    # (pack, TBp) tile: logits[p, r] = <w2, h[r, p*H:(p+1)*H]>.
    logits = jnp.einsum(
        "pk,bk->pb", w2_ref[...], h, preferred_element_type=jnp.float32)
    logits = logits + b2_ref[0, 0]  # scalar bias read from SMEM

    # Sigmoid: exp and the approximate reciprocal both run on the otherwise
    # idle EUP slot (kernel is DMA-bound, so this is free).
    sig = pl.reciprocal(1.0 + jnp.exp(-logits), approx=True)
    o_ref[...] = sig.reshape(o_ref.shape).astype(o_ref.dtype)


def anet2_forward(x, w1, b1, w2_row, b2, *, tb=None,
                  compute_dtype=jnp.bfloat16, out_dtype=jnp.float32):
    """ANet2 forward: sigmoid(relu(x @ w1 + b1) @ w2_row.T + b2).

    x      : [B, F]        w1    : [F, H]  (torch layer1.weight.T)
    b1     : [1, H]        w2_row: [1, H]  (torch layer2.weight)
    b2     : [1, 1]
    tb     : optional batch-tile size in (unpacked) batch rows; auto if None.
    returns: [B, 1] in out_dtype.
    """
    B, F = x.shape
    H = w1.shape[1]

    # ---- feature-axis lane packing (x stays contiguous; reshape is free) ----
    pack = (128 // F) if (F < 128 and 128 % F == 0) else 1
    Fp = pack * F
    Hp = pack * H

    x = x.astype(compute_dtype)
    if pack > 1:
        eye = jnp.eye(pack, dtype=jnp.float32)
        w1_k = jnp.kron(eye, w1.astype(jnp.float32)).astype(compute_dtype)  # (Fp, Hp)
        w2_k = jnp.kron(eye, w2_row.astype(jnp.float32).reshape(1, H))       # (pack, Hp)
        b1_k = jnp.tile(b1.astype(jnp.float32).reshape(1, H), (1, pack))     # (1, Hp)
    else:
        w1_k = w1.astype(compute_dtype)
        w2_k = w2_row.astype(jnp.float32).reshape(1, H)
        b1_k = b1.astype(jnp.float32).reshape(1, H)
    b2_s = jnp.asarray(b2, jnp.float32).reshape(1, 1)  # SMEM scalar

    # ---- batch-tile sizing against the device VMEM budget -------------------
    itemsize = jnp.dtype(compute_dtype).itemsize
    out_itemsize = jnp.dtype(out_dtype).itemsize
    lanes_per_row = max(_round_up(Fp, 128), 128)        # VMEM lane padding of x tile
    x_bytes_per_row = lanes_per_row * itemsize
    o_bytes_per_row = 8 * out_itemsize                   # (1, pack, TBp) pads to 8 sublanes

    try:
        vmem_cap = int(pltpu.get_tpu_info().vmem_capacity_bytes)
    except Exception:  # older jax / query unavailable: assume v7x's 64 MiB per core
        vmem_cap = 64 * 1024 * 1024
    budget = max(int(vmem_cap * 0.75) - (2 << 20), 8 << 20)

    # 2 double-buffered x tiles + 2 output tiles must fit; also target ~8 MiB
    # per x buffer (measured mem-bound sweet spot) so we never over-tile.
    rows_cap = max(8, (budget // (2 * x_bytes_per_row + 2 * o_bytes_per_row)) // 8 * 8)
    rows_target = max(8, ((8 * 1024 * 1024) // x_bytes_per_row) // 8 * 8)

    Bp_rows = pl.cdiv(B, pack)                           # packed rows needed
    if tb is None:
        # >= 4 grid steps when the batch is big enough: feeds both v7x TCs and
        # amortizes the ~0.35us per-step overhead; harmless on v5e/v6e.
        TBp = min(rows_cap, rows_target, max(8, _round_up(pl.cdiv(Bp_rows, 4), 8)))
    else:
        TBp = min(rows_cap, max(8, (tb // pack) // 8 * 8))

    rows_pad = _round_up(max(Bp_rows, TBp), TBp)
    num_tiles = rows_pad // TBp
    b_cover = rows_pad * pack
    if b_cover != B:
        x = jnp.pad(x, ((0, b_cover - B), (0, 0)))
    x_packed = x.reshape(rows_pad, Fp)                   # contiguous => free reshape

    grid_spec = pl.GridSpec(
        grid=(num_tiles,),
        in_specs=[
            pl.BlockSpec((TBp, Fp), lambda i: (i, 0)),            # x: streamed tiles
            pl.BlockSpec((Fp, Hp), lambda i: (0, 0)),             # w1: resident
            pl.BlockSpec((1, Hp), lambda i: (0, 0)),              # b1: resident
            pl.BlockSpec((pack, Hp), lambda i: (0, 0)),           # w2: resident
            pl.BlockSpec(memory_space=pltpu.MemorySpace.SMEM),    # b2: SMEM scalar
        ],
        # Lane-dense output: one (pack, TBp) tile per grid step, batch on lanes.
        out_specs=pl.BlockSpec((1, pack, TBp), lambda i: (i, 0, 0)),
    )

    need = (2 * TBp * x_bytes_per_row
            + 2 * 8 * _round_up(TBp, 128) * out_itemsize
            + (4 << 20))                                  # weights/bias + compiler slack
    vmem_limit = min(int(vmem_cap * 0.9), max(32 << 20, need))

    out_t = pl.pallas_call(
        _anet2_kernel,
        out_shape=jax.ShapeDtypeStruct((num_tiles, pack, TBp), out_dtype),
        grid_spec=grid_spec,
        compiler_params=pltpu.CompilerParams(
            dimension_semantics=("parallel",),   # shard batch tiles across TCs (v7x)
            vmem_limit_bytes=vmem_limit,
        ),
    )(x_packed, w1_k, b1_k, w2_k, b2_s)

    # out_t[t, p, r] holds batch row t*TBp*pack + r*pack + p; untangle and
    # drop the padded rows (tiny [B]-element transpose in the wrapper).
    out = out_t.transpose(0, 2, 1).reshape(rows_pad * pack, 1)
    return out[:B]


def init_anet2_params(key, in_feature, hidden=10):
    """nn.Linear-style uniform init, returned in kernel-friendly layouts."""
    k1w, k1b, k2w, k2b = jax.random.split(key, 4)
    bound1 = 1.0 / jnp.sqrt(jnp.float32(in_feature))
    w1_torch = jax.random.uniform(k1w, (hidden, in_feature), jnp.float32, -bound1, bound1)
    b1 = jax.random.uniform(k1b, (hidden,), jnp.float32, -bound1, bound1)
    bound2 = 1.0 / jnp.sqrt(jnp.float32(hidden))
    w2_torch = jax.random.uniform(k2w, (1, hidden), jnp.float32, -bound2, bound2)
    b2 = jax.random.uniform(k2b, (1,), jnp.float32, -bound2, bound2)

    w1 = w1_torch.T                  # [F, H]
    b1_2d = b1.reshape(1, hidden)    # [1, H]
    w2_row = w2_torch                # [1, H]
    b2_2d = b2.reshape(1, 1)         # [1, 1] -> SMEM
    return w1, b1_2d, w2_row, b2_2d


if __name__ == "__main__":
    key = jax.random.PRNGKey(0)
    k_x, k_p = jax.random.split(key)

    batch, in_feature, hidden = 50, 32, 10
    x = jax.random.normal(k_x, (batch, in_feature), jnp.float32)
    w1, b1, w2_row, b2 = init_anet2_params(k_p, in_feature, hidden)

    # Pure-JAX reference: Linear -> ReLU -> Linear -> Sigmoid (same math as ANet2).
    h_ref = jnp.maximum(
        jnp.dot(x, w1, precision=jax.lax.Precision.HIGHEST) + b1, 0.0)
    ref = jax.nn.sigmoid(
        jnp.dot(h_ref, w2_row.T, precision=jax.lax.Precision.HIGHEST) + b2)

    # Default bf16 streaming path, auto tile size (exercises the lane-packed
    # F=32 -> pack=4 layout plus ragged batch padding). Tolerance covers the
    # bf16 inputs and the EUP approximate reciprocal in the sigmoid.
    out_bf16 = anet2_forward(x, w1, b1, w2_row, b2)
    out_bf16 = jax.block_until_ready(out_bf16)
    assert out_bf16.shape == (batch, 1)
    assert jnp.allclose(out_bf16.astype(jnp.float32), ref, atol=3e-2, rtol=3e-2)

    # f32 path with an explicit small tile (multiple grid steps + padded tail).
    out_f32 = anet2_forward(x, w1, b1, w2_row, b2, tb=16, compute_dtype=jnp.float32)
    out_f32 = jax.block_until_ready(out_f32)
    assert out_f32.shape == (batch, 1)
    assert jnp.allclose(out_f32, ref, atol=1e-2, rtol=1e-2)

    print("KERNEL_OK")
</pallas_src>

<mosaic_0001>
module attributes {stable_mosaic.version = 11 : i64} {
  func.func @_anet2_kernel(%arg0: i32, %arg1: memref<8x128xbf16, #tpu.memory_space<vmem>>, %arg2: memref<128x40xbf16, #tpu.memory_space<vmem>>, %arg3: memref<1x40xf32, #tpu.memory_space<vmem>>, %arg4: memref<4x40xf32, #tpu.memory_space<vmem>>, %arg5: memref<1x1xf32, #tpu.memory_space<smem>>, %arg6: memref<1x4x8xf32, #tpu.memory_space<vmem>>) attributes {dimension_semantics = [#tpu.dimension_semantics<parallel>], iteration_bounds = array<i64: 2>, scalar_prefetch = 0 : i64, scratch_operands = 0 : i64, tpu.core_type = #tpu.core_type<tc>, window_params = [{transform_indices = @transform_0, window_bounds = array<i64: 8, 128>}, {pipeline_mode = #tpu.pipeline_mode<synchronous>, transform_indices = @transform_1, window_bounds = array<i64: 128, 40>}, {pipeline_mode = #tpu.pipeline_mode<synchronous>, transform_indices = @transform_2, window_bounds = array<i64: 1, 40>}, {pipeline_mode = #tpu.pipeline_mode<synchronous>, transform_indices = @transform_3, window_bounds = array<i64: 4, 40>}, {transform_indices = @transform_4, window_bounds = array<i64: 1, 1>}, {transform_indices = @transform_5, window_bounds = array<i64: 1, 4, 8>}]} {
    %c0 = arith.constant 0 : index
    %c0_0 = arith.constant 0 : index
    %0 = vector.load %arg1[%c0, %c0_0] : memref<8x128xbf16, #tpu.memory_space<vmem>>, vector<8x128xbf16>
    %c0_1 = arith.constant 0 : index
    %c0_2 = arith.constant 0 : index
    %1 = vector.load %arg2[%c0_1, %c0_2] : memref<128x40xbf16, #tpu.memory_space<vmem>>, vector<128x40xbf16>
    %cst = arith.constant dense<0.000000e+00> : vector<8x40xf32>
    %2 = tpu.matmul %0, %1, %cst {dimension_numbers = #tpu.dot_dimension_numbers<[1], [0], [0], [1], [0, 0, 1, 1], [], []>} : vector<8x128xbf16>, vector<128x40xbf16>, vector<8x40xf32> -> vector<8x40xf32>
    %c0_3 = arith.constant 0 : index
    %c0_4 = arith.constant 0 : index
    %3 = vector.load %arg3[%c0_3, %c0_4] : memref<1x40xf32, #tpu.memory_space<vmem>>, vector<1x40xf32>
    %4 = vector.broadcast %3 : vector<1x40xf32> to vector<8x40xf32>
    %5 = arith.addf %2, %4 : vector<8x40xf32>
    %cst_5 = arith.constant 0.000000e+00 : f32
    %6 = vector.broadcast %cst_5 : f32 to vector<8x40xf32>
    %7 = arith.maximumf %5, %6 : vector<8x40xf32>
    %c0_6 = arith.constant 0 : index
    %c0_7 = arith.constant 0 : index
    %8 = vector.load %arg4[%c0_6, %c0_7] : memref<4x40xf32, #tpu.memory_space<vmem>>, vector<4x40xf32>
    "tpu.trace_start"() <{level = 10 : i32, message = "pk,bk->pb"}> : () -> ()
    %cst_8 = arith.constant dense<0.000000e+00> : vector<4x8xf32>
    %9 = tpu.matmul %8, %7, %cst_8 {dimension_numbers = #tpu.dot_dimension_numbers<[1], [1], [0], [0], [0, 0, 1, 0], [], []>} : vector<4x40xf32>, vector<8x40xf32>, vector<4x8xf32> -> vector<4x8xf32>
    "tpu.trace_stop"() : () -> ()
    %c0_9 = arith.constant 0 : index
    %c0_10 = arith.constant 0 : index
    %10 = memref.load %arg5[%c0_9, %c0_10] : memref<1x1xf32, #tpu.memory_space<smem>>
    %11 = vector.broadcast %10 : f32 to vector<4x8xf32>
    %12 = arith.addf %9, %11 : vector<4x8xf32>
    %cst_11 = arith.constant 0.000000e+00 : f32
    %13 = vector.broadcast %cst_11 : f32 to vector<4x8xf32>
    %14 = arith.subf %13, %12 : vector<4x8xf32>
    %15 = math.exp %14 : vector<4x8xf32>
    %cst_12 = arith.constant 1.000000e+00 : f32
    %16 = vector.broadcast %cst_12 : f32 to vector<4x8xf32>
    %17 = arith.addf %16, %15 : vector<4x8xf32>
    %18 = tpu.reciprocal %17 {approx = true} : vector<4x8xf32> -> vector<4x8xf32>
    %19 = vector.shape_cast %18 : vector<4x8xf32> to vector<1x4x8xf32>
    %c0_13 = arith.constant 0 : index
    %c0_14 = arith.constant 0 : index
    %c0_15 = arith.constant 0 : index
    %20 = vector.load %arg6[%c0_13, %c0_14, %c0_15] : memref<1x4x8xf32, #tpu.memory_space<vmem>>, vector<1x4x8xf32>
    tpu.vector_store %arg6[%c0_13, %c0_14, %c0_15], %19 {strides = array<i32>} : memref<1x4x8xf32, #tpu.memory_space<vmem>>, vector<1x4x8xf32>,
    return
  }
  func.func @transform_0(%arg0: i32) -> (i32, i32) {
    %c0_i32 = arith.constant 0 : i32
    %c0_i32_0 = arith.constant 0 : i32
    return %arg0, %c0_i32 : i32, i32
  }
  func.func @transform_1(%arg0: i32) -> (i32, i32) {
    %c0_i32 = arith.constant 0 : i32
    %c0_i32_0 = arith.constant 0 : i32
    %c0_i32_1 = arith.constant 0 : i32
    return %c0_i32, %c0_i32_0 : i32, i32
  }
  func.func @transform_2(%arg0: i32) -> (i32, i32) {
    %c0_i32 = arith.constant 0 : i32
    %c0_i32_0 = arith.constant 0 : i32
    %c0_i32_1 = arith.constant 0 : i32
    return %c0_i32, %c0_i32_0 : i32, i32
  }
  func.func @transform_3(%arg0: i32) -> (i32, i32) {
    %c0_i32 = arith.constant 0 : i32
    %c0_i32_0 = arith.constant 0 : i32
    %c0_i32_1 = arith.constant 0 : i32
    return %c0_i32, %c0_i32_0 : i32, i32
  }
  func.func @transform_4(%arg0: i32) -> (i32, i32) {
    %c0_i32 = arith.constant 0 : i32
    %c0_i32_0 = arith.constant 0 : i32
    %c0_i32_1 = arith.constant 0 : i32
    return %c0_i32, %c0_i32_0 : i32, i32
  }
  func.func @transform_5(%arg0: i32) -> (i32, i32, i32) {
    %c0_i32 = arith.constant 0 : i32
    %c0_i32_0 = arith.constant 0 : i32
    %c0_i32_1 = arith.constant 0 : i32
    return %arg0, %c0_i32, %c0_i32_0 : i32, i32, i32
  }
}

</mosaic_0001>

<llo_original>
// kernel: tpu_custom_call.1
$region0: #{tpu_custom_call.1}
  #allocation0 [shape = 'u32[]', space=smem, size = 0x4, offset = 0x4, fixed_abs, tag = 'smem constant byte address 0x4 - core index']
  #allocation1 [shape = 'u32[72,128]{1,0:T(1,128)}', space=vmem, size = 0x9000, scoped, tag = 'internal scratch']
  #allocation2 [shape = 'f32[1,1]{1,0:T(1,128)S(6)}', space=smem, size = 0x200, scoped, tag = 'scoped memory for tpu_custom_call.1']
  %s0 = inlined_call_operand.vmem [shape: bf16[16,128], index: 0, kind: input, shape index: {}]
  %s1 = inlined_call_operand.vmem [shape: bf16[128,40], index: 1, kind: input, shape index: {}]
  %s2 = inlined_call_operand.vmem [shape: f32[1,40], index: 2, kind: input, shape index: {}]
  %s3 = inlined_call_operand.vmem [shape: f32[4,40], index: 3, kind: input, shape index: {}]
  %s4 = inlined_call_operand.<no memory space> [shape: f32[1,1], index: 4, kind: input, shape index: {}]
  %s5 = inlined_call_operand.hbm [shape: f32[2,4,8], index: 5, kind: output, shape index: {}]
  %s6 = sld [smem:[#allocation0]]
  $region53: #{tpu_custom_call.1} parent=0
    _
  %s8 = ssub.s32 1, %s6
  %s9 = scalar_select 0, %s8, %s6
  %10 = sst [smem:[#allocation2]] %s4
  $region1: #{tpu_custom_call.1} parent=0
    #allocation3 [shape = 'u8[4096]{0}', space=vmem, size = 0x1000, scoped, tag = 'output window, operand 0']
    #allocation4 [shape = 's32[2]{0}', space=sflag, size = 0x8, scoped, tag = 'scoped memory for tpu_custom_call.1']
    %11 = vsyncpa [#allocation4], 0
    %s12 = scalar_lea.sflag [#allocation4], 1
    %13 = vsyncpa %s12, 0
    loop: start=0, step=1, limit=4
    $region2: #{tpu_custom_call.1} parent=1 // loop_pre_header
      _
    $region3: #{tpu_custom_call.1} parent=1 // loop_header
      %s15 = sphi 0, %s19
      %p16 = scmp.ge.s32.totalorder %s15, 4
      %s25 = sphi 0, %s27
      %s28 = sphi 0, %s25
      %s29 = sphi 0, %s28
      %s45 = sphi 0, %s29
      %s49 = sphi 0, %s49
      %s51 = sphi 0, %s49
      %s52 = sphi 0, %s51
      %s66 = sphi 0, %s52
      %s70 = sphi 0, %s70
      %s72 = sphi 0, %s70
      %s73 = sphi 0, %s72
      %s87 = sphi 0, %s73
      %s91 = sphi 0, %s91
      %s93 = sphi 0, %s91
      %s94 = sphi 0, %s93
      %s108 = sphi 0, %s94
      %s112 = sphi 0, %s112
      %s114 = sphi 0, %s112
      %s115 = sphi 0, %s114
      %s129 = sphi 0, %s115
      %s135 = sphi 0, %s137
      %s138 = sphi 0, %s135
      %s139 = sphi 0, %s138
      %s155 = sphi 0, %s139
    $region4: #{tpu_custom_call.1} parent=1 // loop_header_branch
      %18 = sbr.rel (%p16) target = $region8
    $region5: #{tpu_custom_call.1} parent=1 // loop_body
      %s20 = ssub.s32 %s15, 1
      %s21 = ssub.s32 %s15, 2
      %s22 = sadd.s32 %s15, 1
      %s23 = ssub.s32 %s15, %s22
      %p24 = scmp.eq.s32.totalorder %s23, 0
      %s26 = sadd.s32 %s25, 1
      %s27 = scalar_select %p24, %s25, %s26
      %p30 = pneg %p24
      %p31 = scmp.eq.s32.totalorder %s15, 1
      %p32 = por %p30, %p31
      %p33 = scmp.ne.s32.totalorder %s25, %s28
      %p34 = scmp.eq.s32.totalorder %s15, 0
      %p35 = por %p33, %p34
      %p36 = scmp.ne.s32.totalorder %s25, %s28
      %p37 = scmp.eq.s32.totalorder %s20, 1
      %p38 = por %p36, %p37
      %p39 = scmp.ne.s32.totalorder %s28, %s29
      %p40 = scmp.eq.s32.totalorder %s20, 0
      %p41 = por %p39, %p40
      %p42 = scmp.ne.s32.totalorder %s28, %s29
      %p43 = scmp.eq.s32.totalorder %s21, 1
      %p44 = por %p42, %p43
      %p46 = scmp.ne.s32.totalorder %s29, %s45
      %p47 = scmp.eq.s32.totalorder %s21, 0
      %p48 = por %p46, %p47
      %s50 = sadd.s32 %s49, 1
      %p53 = scmp.eq.s32.totalorder %s15, 1
      %p54 = scmp.ne.s32.totalorder %s49, %s51
      %p55 = scmp.eq.s32.totalorder %s15, 0
      %p56 = por %p54, %p55
      %p57 = scmp.ne.s32.totalorder %s49, %s51
      %p58 = scmp.eq.s32.totalorder %s20, 1
      %p59 = por %p57, %p58
      %p60 = scmp.ne.s32.totalorder %s51, %s52
      %p61 = scmp.eq.s32.totalorder %s20, 0
      %p62 = por %p60, %p61
      %p63 = scmp.ne.s32.totalorder %s51, %s52
      %p64 = scmp.eq.s32.totalorder %s21, 1
      %p65 = por %p63, %p64
      %p67 = scmp.ne.s32.totalorder %s52, %s66
      %p68 = scmp.eq.s32.totalorder %s21, 0
      %p69 = por %p67, %p68
      %s71 = sadd.s32 %s70, 1
      %p74 = scmp.eq.s32.totalorder %s15, 1
      %p75 = scmp.ne.s32.totalorder %s70, %s72
      %p76 = scmp.eq.s32.totalorder %s15, 0
      %p77 = por %p75, %p76
      %p78 = scmp.ne.s32.totalorder %s70, %s72
      %p79 = scmp.eq.s32.totalorder %s20, 1
      %p80 = por %p78, %p79
      %p81 = scmp.ne.s32.totalorder %s72, %s73
      %p82 = scmp.eq.s32.totalorder %s20, 0
      %p83 = por %p81, %p82
      %p84 = scmp.ne.s32.totalorder %s72, %s73
      %p85 = scmp.eq.s32.totalorder %s21, 1
      %p86 = por %p84, %p85
      %p88 = scmp.ne.s32.totalorder %s73, %s87
      %p89 = scmp.eq.s32.totalorder %s21, 0
      %p90 = por %p88, %p89
      %s92 = sadd.s32 %s91, 1
      %p95 = scmp.eq.s32.totalorder %s15, 1
      %p96 = scmp.ne.s32.totalorder %s91, %s93
      %p97 = scmp.eq.s32.totalorder %s15, 0
      %p98 = por %p96, %p97
      %p99 = scmp.ne.s32.totalorder %s91, %s93
      %p100 = scmp.eq.s32.totalorder %s20, 1
      %p101 = por %p99, %p100
      %p102 = scmp.ne.s32.totalorder %s93, %s94
      %p103 = scmp.eq.s32.totalorder %s20, 0
      %p104 = por %p102, %p103
      %p105 = scmp.ne.s32.totalorder %s93, %s94
      %p106 = scmp.eq.s32.totalorder %s21, 1
      %p107 = por %p105, %p106
      %p109 = scmp.ne.s32.totalorder %s94, %s108
      %p110 = scmp.eq.s32.totalorder %s21, 0
      %p111 = por %p109, %p110
      %s113 = sadd.s32 %s112, 1
      %p116 = scmp.eq.s32.totalorder %s15, 1
      %p117 = scmp.ne.s32.totalorder %s112, %s114
      %p118 = scmp.eq.s32.totalorder %s15, 0
      %p119 = por %p117, %p118
      %p120 = scmp.ne.s32.totalorder %s112, %s114
      %p121 = scmp.eq.s32.totalorder %s20, 1
      %p122 = por %p120, %p121
      %p123 = scmp.ne.s32.totalorder %s114, %s115
      %p124 = scmp.eq.s32.totalorder %s20, 0
      %p125 = por %p123, %p124
      %p126 = scmp.ne.s32.totalorder %s114, %s115
      %p127 = scmp.eq.s32.totalorder %s21, 1
      %p128 = por %p126, %p127
      %p130 = scmp.ne.s32.totalorder %s115, %s129
      %p131 = scmp.eq.s32.totalorder %s21, 0
      %p132 = por %p130, %p131
      %s133 = ssub.s32 %s15, %s22
      %p134 = scmp.eq.s32.totalorder %s133, 0
      %s136 = sadd.s32 %s135, 1
      %s137 = scalar_select %p134, %s135, %s136
      %p140 = pneg %p134
      %p141 = scmp.eq.s32.totalorder %s15, 1
      %p142 = por %p140, %p141
      %p143 = scmp.ne.s32.totalorder %s135, %s138
      %p144 = scmp.eq.s32.totalorder %s15, 0
      %p145 = por %p143, %p144
      %p146 = scmp.ne.s32.totalorder %s135, %s138
      %p147 = scmp.eq.s32.totalorder %s20, 1
      %p148 = por %p146, %p147
      %p149 = scmp.ne.s32.totalorder %s138, %s139
      %p150 = scmp.eq.s32.totalorder %s20, 0
      %p151 = por %p149, %p150
      %p152 = scmp.ne.s32.totalorder %s138, %s139
      %p153 = scmp.eq.s32.totalorder %s21, 1
      %p154 = por %p152, %p153
      %p156 = scmp.ne.s32.totalorder %s139, %s155
      %p157 = scmp.eq.s32.totalorder %s21, 0
      %p158 = por %p156, %p157
      %p159 = scmp.le.s32.totalorder 1, %s15
      %p160 = scmp.lt.s32.totalorder %s15, 3
      %p161 = pnand %p159, %p160
      %p162 = pneg %p161
      // Predicated region
      $region9: #{tpu_custom_call.1} parent=5 // pred_check
        _
      $region10: #{tpu_custom_call.1} parent=5 // pred_check_branch
        %164 = sbr.rel (%p161) target = $region12
      $region11: #{tpu_custom_call.1} parent=5 // pred_region
        %s165 = ssub.s32 %s15, 1
        // Predicated region
        $region13: #{tpu_custom_call.1} parent=11 // pred_check
          %p166 = pneg %p62
        $region14: #{tpu_custom_call.1} parent=11 // pred_check_branch
          %168 = sbr.rel (%p166) target = $region16
        $region15: #{tpu_custom_call.1} parent=11 // pred_region
          _
        $region16: #{tpu_custom_call.1} parent=11 // pred_fallthru
          _
        // Predicated region
        $region17: #{tpu_custom_call.1} parent=11 // pred_check
          %p169 = pneg %p83
        $region18: #{tpu_custom_call.1} parent=11 // pred_check_branch
          %171 = sbr.rel (%p169) target = $region20
        $region19: #{tpu_custom_call.1} parent=11 // pred_region
          _
        $region20: #{tpu_custom_call.1} parent=11 // pred_fallthru
          _
        // Predicated region
        $region21: #{tpu_custom_call.1} parent=11 // pred_check
          %p172 = pneg %p104
        $region22: #{tpu_custom_call.1} parent=11 // pred_check_branch
          %174 = sbr.rel (%p172) target = $region24
        $region23: #{tpu_custom_call.1} parent=11 // pred_region
          _
        $region24: #{tpu_custom_call.1} parent=11 // pred_fallthru
          _
        // Predicated region
        $region25: #{tpu_custom_call.1} parent=11 // pred_check
          %p175 = pneg %p125
        $region26: #{tpu_custom_call.1} parent=11 // pred_check_branch
          %177 = sbr.rel (%p175) target = $region28
        $region27: #{tpu_custom_call.1} parent=11 // pred_region
          _
        $region28: #{tpu_custom_call.1} parent=11 // pred_fallthru
          _
      $region12: #{tpu_custom_call.1} parent=5 // pred_fallthru
        _
      %p178 = scmp.lt.s32.totalorder %s15, 2
      // Predicated region
      $region29: #{tpu_custom_call.1} parent=5 // pred_check
        %p179 = pneg %p178
      $region30: #{tpu_custom_call.1} parent=5 // pred_check_branch
        %181 = sbr.rel (%p179) target = $region32
      $region31: #{tpu_custom_call.1} parent=5 // pred_region
        // Predicated region
        $region33: #{tpu_custom_call.1} parent=31 // pred_check
          %p182 = pneg %p35
        $region34: #{tpu_custom_call.1} parent=31 // pred_check_branch
          %184 = sbr.rel (%p182) target = $region36
        $region35: #{tpu_custom_call.1} parent=31 // pred_region
          %p185 = scmp.lt.s32.totalorder %s15, 1
          %s186 = scalar_select %p185, %s15, 1
          %s187 = smul.addr %s186, 4
          %s188 = scalar_lea.vmem %s0, %s187
        $region36: #{tpu_custom_call.1} parent=31 // pred_fallthru
          _
      $region32: #{tpu_custom_call.1} parent=5 // pred_fallthru
        _
      %p189 = scmp.le.s32.totalorder 1, %s15
      %p190 = scmp.lt.s32.totalorder %s15, 3
      %p191 = pnand %p189, %p190
      %p192 = pneg %p191
      // Predicated region
      $region37: #{tpu_custom_call.1} parent=5 // pred_check
        _
      $region38: #{tpu_custom_call.1} parent=5 // pred_check_branch
        %194 = sbr.rel (%p191) target = $region40
      $region39: #{tpu_custom_call.1} parent=5 // pred_region
        %s195 = ssub.s32 %s15, 1
        %p196 = scmp.lt.s32.totalorder %s20, 1
        %s197 = scalar_select %p196, %s20, 1
        %s198 = smul.addr %s197, 4
        %s199 = scalar_lea.vmem %s0, %s198
        %p200 = pneg %p41
        %p201 = pneg %p38
        %p202 = pneg %p62
        %p203 = pneg %p59
        %p204 = pneg %p83
        %p205 = pneg %p80
        %p206 = pneg %p104
        %p207 = pneg %p101
        %p208 = pneg %p125
        %p209 = pneg %p122
        %p210 = pneg %p151
        %p211 = pneg %p148
        %s212 = sand.u32 %s138, 1
        %s213 = scalar_lea.sflag [#allocation4], %s212
        %s214 = sand.u32 %s138, 1
        %s215 = smul.addr %s214, 4
        %s216 = scalar_lea.vmem [#allocation3], %s215
        %p217 = scmp.lt.s32.totalorder %s20, 1
        %s218 = scalar_select %p217, %s20, 1
        %s219 = smul.addr %s218, 4
        %s220 = scalar_lea.vmem %s0, %s219
        %v221 = vld [vmem:[%s220] sm:$0xf]
        %v222 = vld [vmem:[%s1] sm:$0xf]
        %v223 = vld [vmem:[%s1 + $0x4] sm:$0xf]
        %v224 = vld [vmem:[%s1 + $0x8] sm:$0xf]
        %v225 = vld [vmem:[%s1 + $0xc] sm:$0xf]
        %v226 = vld [vmem:[%s1 + $0x10] sm:$0xf]
        %v227 = vld [vmem:[%s1 + $0x14] sm:$0xf]
        %v228 = vld [vmem:[%s1 + $0x18] sm:$0xf]
        %v229 = vld [vmem:[%s1 + $0x1c] sm:$0xf]
        %v230 = vld [vmem:[%s1 + $0x20] sm:$0xf]
        %v231 = vld [vmem:[%s1 + $0x24] sm:$0xf]
        %v232 = vld [vmem:[%s1 + $0x28] sm:$0xf]
        %v233 = vld [vmem:[%s1 + $0x2c] sm:$0xf]
        %v234 = vld [vmem:[%s1 + $0x30] sm:$0xf]
        %v235 = vld [vmem:[%s1 + $0x34] sm:$0xf]
        %v236 = vld [vmem:[%s1 + $0x38] sm:$0xf]
        %v237 = vld [vmem:[%s1 + $0x3c] sm:$0xf]
        %v238 = vld [vmem:[%s2] sm:$0x1]
        %v240 = vperm.slane %v238, 0
        %v258 = vunpack.c.l.b16 %v222
        %v259 = vunpack.c.l.b16 %v223
        %v260 = vunpack.c.l.b16 %v224
        %v261 = vunpack.c.l.b16 %v225
        %v262 = vunpack.c.l.b16 %v226
        %v263 = vunpack.c.l.b16 %v227
        %v264 = vunpack.c.l.b16 %v228
        %v265 = vunpack.c.l.b16 %v229
        %v266 = vunpack.c.l.b16 %v230
        %v267 = vunpack.c.l.b16 %v231
        %v268 = vunpack.c.l.b16 %v232
        %v269 = vunpack.c.l.b16 %v233
        %v270 = vunpack.c.l.b16 %v234
        %v271 = vunpack.c.l.b16 %v235
        %v272 = vunpack.c.l.b16 %v236
        %v273 = vunpack.c.l.b16 %v237
        %v274 = vpack.c.b16 %v259, %v258
        %v275 = vpack.c.b16 %v261, %v260
        %v276 = vpack.c.b16 %v263, %v262
        %v277 = vpack.c.b16 %v265, %v264
        %v278 = vpack.c.b16 %v267, %v266
        %v279 = vpack.c.b16 %v269, %v268
        %v280 = vpack.c.b16 %v271, %v270
        %v281 = vpack.c.b16 %v273, %v272
        %290 = vmatpush.bf16.msra.mxu0 %v281
        %291 = vmatpush.bf16.msra.mxu0 %v280
        %292 = vmatpush.bf16.msra.mxu0 %v279
        %293 = vmatpush.bf16.msra.mxu0 %v278
        %294 = vmatpush.bf16.msra.mxu0 %v277
        %295 = vmatpush.bf16.msra.mxu0 %v276
        %296 = vmatpush.bf16.msra.mxu0 %v275
        %297 = vmatpush.bf16.msra.mxu0 %v274
        %298 = vmatmul.bf16.gmra.mxu0 %v221
        %v299 = vpop.f32.mrf.mxu0
        %v300 = vadd.f32 %v240, %v299
        %v301 = vpop.f32.mrf.mxu0
        %302 = vdwg.mxu0
        %v303 = vmax.f32 %v300, 0.0
        %v304 = vld [vmem:[%s3] sm:$0xf]
        %s305 = sld [smem:[#allocation2]]
        %v306 = vstv %s305
        %vm307 = vcmask 326656
        %v309 = vsel %vm307, %v304, 0
        %v312 = vsel %vm307, %v303, 0
        %314 = vmatpush.xpose.msra.mxu0 0.0
        %315 = vmatpush.xpose.msra.mxu0 0.0
        %316 = vmatpush.xpose.msra.mxu0 0.0
        %317 = vmatpush.xpose.msra.mxu0 0.0
        %318 = vmatpush.xpose.msra.mxu0 0.0
        %319 = vmatpush.xpose.msra.mxu0 0.0
        %320 = vmatpush.xpose.msra.mxu0 0.0
        %321 = vmatpush.xpose.msra.mxu0 0.0
        %322 = vmatpush.xpose.msra.mxu0 0.0
        %323 = vmatpush.xpose.msra.mxu0 0.0
        %324 = vmatpush.xpose.msra.mxu0 0.0
        %325 = vmatpush.xpose.msra.mxu0 0.0
        %326 = vmatpush.xpose.msra.mxu0 0.0
        %327 = vmatpush.xpose.msra.mxu0 0.0
        %328 = vmatpush.xpose.msra.mxu0 0.0
        %329 = vmatpush.xpose.msra.mxu0 %v312
        %330 = vmatmul.f32.gmra.mxu0 %v309
        %v331 = vpop.f32.mrf.mxu0
        %v332 = vadd.f32 %v306, %v331
        %333 = vdwg.mxu0
        %v334 = vsub.f32 0.0, %v332
        %v335 = vmul.f32 %v334, 1.442695
        %v336 = vpow.pop %v335
        %v337 = vadd.f32 %v336, 1.0
        %v338 = vrcp.pop %v337
        %vm339 = vcmask 60416
        %340 = vst.msk [vmem:[%s216] sm:$0xf] %vm339, %v338
        %s341 = sand.u32 %s138, 1
        %s342 = scalar_lea.sflag [#allocation4], %s341
        %s343 = sand.u32 %s138, 1
        %s344 = smul.addr %s343, 4
        %s345 = scalar_lea.vmem [#allocation3], %s344
        // Predicated region
        $region41: #{tpu_custom_call.1} parent=39 // pred_check
          %p346 = pneg %p148
        $region42: #{tpu_custom_call.1} parent=39 // pred_check_branch
          %348 = sbr.rel (%p346) target = $region44
        $region43: #{tpu_custom_call.1} parent=39 // pred_region
          %350 = vsyncadd %s342, 0
          %s351 = smul.addr %s20, 4
          %s352 = scalar_lea.hbm %s5, %s351
          %s354 = sshll.u32 %s345, 4
          %s355 = int_to_ptr.vmem [resolvable:$true] %s354
          %s356 = sshll.u32 %s352, 4
          %s357 = int_to_ptr.hbm [resolvable:$true] %s356
          %359 = dma.vmem_to_hbm [thread:$0]  %s355, 64, %s357, %s342
        $region44: #{tpu_custom_call.1} parent=39 // pred_fallthru
          _
      $region40: #{tpu_custom_call.1} parent=5 // pred_fallthru
        _
      %p360 = scmp.le.s32.totalorder 2, %s15
      // Predicated region
      $region45: #{tpu_custom_call.1} parent=5 // pred_check
        %p361 = pneg %p360
      $region46: #{tpu_custom_call.1} parent=5 // pred_check_branch
        %363 = sbr.rel (%p361) target = $region48
      $region47: #{tpu_custom_call.1} parent=5 // pred_region
        %s364 = ssub.s32 %s15, 2
        // Predicated region
        $region49: #{tpu_custom_call.1} parent=47 // pred_check
          %p365 = pneg %p154
        $region50: #{tpu_custom_call.1} parent=47 // pred_check_branch
          %367 = sbr.rel (%p365) target = $region52
        $region51: #{tpu_custom_call.1} parent=47 // pred_region
          %s368 = sand.u32 %s139, 1
          %s369 = scalar_lea.sflag [#allocation4], %s368
          %s370 = sand.u32 %s139, 1
          %s371 = smul.addr %s370, 4
          %s372 = scalar_lea.vmem [#allocation3], %s371
          %374 = dma.done %s369, 64
        $region52: #{tpu_custom_call.1} parent=47 // pred_fallthru
          _
      $region48: #{tpu_custom_call.1} parent=5 // pred_fallthru
        _
    $region6: #{tpu_custom_call.1} parent=1 // loop_footer
      %s19 = sadd.s32 1, %s15
    $region7: #{tpu_custom_call.1} parent=1 // loop_footer_branch
      %14 = sbr.rel target = $region3
    $region8: #{tpu_custom_call.1} parent=1 // loop_exit
      _
    %375 = vsyncpa [#allocation4], 1
    %s376 = scalar_lea.sflag [#allocation4], 1
    %377 = vsyncpa %s376, 1

</llo_original>
